<compile_context>
chip_gen: v7x
topology: tpu7x:2x2x1
jax: 0.10.0
libtpu: 0.0.40
codegen_flags: <defaults>
</compile_context>

<pallas_src>
import functools
import math

import jax
import jax.numpy as jnp
from jax.experimental import pallas as pl
from jax.experimental.pallas import tpu as pltpu

SUBLANE = 8          # batch tile must be a multiple of this
MAX_TILE_B = 8192    # keeps a single step inside v7x's 32 MiB scoped VMEM


# ----------------------------------------------------------------------------
# Pallas kernel: one batch tile through the whole MLP. Weights arrive already
# masked and transposed to (in, out), so the body is four small MXU matmuls
# (layer 0 is split into x / cond parts) + two GELUs.
# ----------------------------------------------------------------------------
def _gelu_exact(x):
    # torch.nn.GELU() / F.gelu default: 0.5 * x * (1 + erf(x / sqrt(2)))
    return 0.5 * x * (1.0 + jax.lax.erf(x * (1.0 / math.sqrt(2.0))))


def _made_kernel(x_ref, xc_ref, w0a_ref, w0c_ref, b0_ref, w1_ref, b1_ref,
                 w2_ref, b2_ref, out_ref, *, approx_gelu):
    # x_ref   : (TILE_B, n_in)        xc_ref : (TILE_B, cond_dim)
    # w0a_ref : (n_in, H)   = (m0*W0).T        w0c_ref : (cond_dim, H) = Wc.T
    # w1_ref  : (H, H)      = (m1*W1).T        w2_ref  : (H, n_out_total) = (m2*W2).T
    if approx_gelu:
        gelu = lambda v: jax.nn.gelu(v, approximate=True)   # EUP tanh path
    else:
        gelu = _gelu_exact                                  # exact torch numerics

    wdt = w0a_ref.dtype
    h = (jnp.dot(x_ref[...].astype(wdt), w0a_ref[...],
                 preferred_element_type=jnp.float32)
         + jnp.dot(xc_ref[...].astype(wdt), w0c_ref[...],
                   preferred_element_type=jnp.float32)
         + b0_ref[...])
    h = gelu(h)                                                       # (TILE_B, H)

    h = jnp.dot(h.astype(wdt), w1_ref[...],
                preferred_element_type=jnp.float32) + b1_ref[...]
    h = gelu(h)                                                       # (TILE_B, H)

    out = jnp.dot(h.astype(wdt), w2_ref[...],
                  preferred_element_type=jnp.float32) + b2_ref[...]   # (TILE_B, n_out)
    out_ref[...] = out.astype(out_ref.dtype)


# ----------------------------------------------------------------------------
# Host-side constant folding: mask*W, transpose to (in, out), split cond layer.
# ----------------------------------------------------------------------------
def fuse_made_params(params, weight_dtype=jnp.float32):
    """Fold masks and pre-transpose weights to (in_features, out_features).

    weight_dtype=jnp.bfloat16 halves weight/activation matmul bytes on v6e/v7x
    (keep f32 on v5e or when matching the f32 reference bit-tight).
    """
    (w0, m0, b0, wc, w1, m1, b1, w2, m2, b2) = params
    w0a = (m0 * w0).T.astype(weight_dtype)    # (n_in, H)
    w0c = wc.T.astype(weight_dtype)           # (cond_dim, H)
    w1_t = (m1 * w1).T.astype(weight_dtype)   # (H, H)
    w2_t = (m2 * w2).T.astype(weight_dtype)   # (H, n_out_total)
    return (w0a, w0c, b0, w1_t, b1, w2_t, b2)


# ----------------------------------------------------------------------------
# Tile selection: large tiles to amortize per-step overhead, but capped for
# v7x VMEM, and split so the 1-D "parallel" grid can use both v7x TensorCores.
# ----------------------------------------------------------------------------
def _pick_tile_b(batch, tile_b_req):
    tile_b = max(SUBLANE, min(int(tile_b_req), MAX_TILE_B))
    tile_b = (tile_b // SUBLANE) * SUBLANE
    b_sub = pl.cdiv(batch, SUBLANE) * SUBLANE
    if tile_b >= b_sub:
        # Whole batch fits in one tile; use 2 grid steps when possible so the
        # parallel axis can shard across both TensorCores (v7x megacore).
        n_tiles = 2 if b_sub >= 2 * SUBLANE else 1
        tile_b = pl.cdiv(b_sub // SUBLANE, n_tiles) * SUBLANE
    b_pad = pl.cdiv(batch, tile_b) * tile_b
    return tile_b, b_pad


# ----------------------------------------------------------------------------
# Wrapper: batch-tiled grid, weights resident in VMEM via constant index_maps.
# ----------------------------------------------------------------------------
def made_forward(x, x_cond, fused_params, *, tile_b=4096, approx_gelu=False):
    (w0a, w0c, b0, w1_t, b1, w2_t, b2) = fused_params

    B, n_in = x.shape
    cond_dim = x_cond.shape[1]
    H = w1_t.shape[0]
    n_out_total = w2_t.shape[1]

    tile_b, b_pad = _pick_tile_b(B, tile_b)

    x = x.astype(jnp.float32)
    x_cond = x_cond.astype(jnp.float32)
    if b_pad != B:
        x = jnp.pad(x, ((0, b_pad - B), (0, 0)))
        x_cond = jnp.pad(x_cond, ((0, b_pad - B), (0, 0)))

    grid = (b_pad // tile_b,)
    batch_map = lambda i: (i, 0)
    const = lambda i: (0, 0)   # weights / biases: same (whole) block every step

    weight_bytes = sum(int(a.size) * a.dtype.itemsize
                       for a in (w0a, w0c, b0, w1_t, b1, w2_t, b2))
    cost = pl.CostEstimate(
        flops=2 * b_pad * (n_in * H + cond_dim * H + H * H + H * n_out_total),
        transcendentals=2 * b_pad * H,
        bytes_accessed=4 * b_pad * (n_in + cond_dim + n_out_total) + weight_bytes,
    )

    out = pl.pallas_call(
        functools.partial(_made_kernel, approx_gelu=approx_gelu),
        out_shape=jax.ShapeDtypeStruct((b_pad, n_out_total), jnp.float32),
        grid=grid,
        in_specs=[
            pl.BlockSpec((tile_b, n_in), batch_map),      # x tile
            pl.BlockSpec((tile_b, cond_dim), batch_map),  # x_cond tile
            pl.BlockSpec((n_in, H), const),               # (m0*W0).T
            pl.BlockSpec((cond_dim, H), const),           # Wc.T
            pl.BlockSpec((1, H), const),                  # b0
            pl.BlockSpec((H, H), const),                  # (m1*W1).T
            pl.BlockSpec((1, H), const),                  # b1
            pl.BlockSpec((H, n_out_total), const),        # (m2*W2).T  (true width)
            pl.BlockSpec((1, n_out_total), const),        # b2
        ],
        out_specs=pl.BlockSpec((tile_b, n_out_total), batch_map),
        compiler_params=pltpu.CompilerParams(
            dimension_semantics=("parallel",)),           # batch axis across TCs (v7x)
        cost_estimate=cost,
    )(x, x_cond, w0a, w0c, b0, w1_t, b1, w2_t, b2)

    return out[:B] if b_pad != B else out


# ----------------------------------------------------------------------------
# Parameter / mask construction (plain JAX glue, mirrors MADE.__init__/get_masks)
# ----------------------------------------------------------------------------
def make_masks(n_in, dim_list):
    """Exact port of MADE.get_masks()."""
    L = len(dim_list) - 2  # == len(sizes)
    masks = {}
    for i in range(L + 1):
        if i == 0:
            in_degrees = jnp.arange(n_in) % n_in
        else:
            in_degrees = jnp.arange(dim_list[i]) % (n_in - 1)
        if i == L:
            out_degrees = jnp.arange(dim_list[i + 1]) % n_in - 1   # (arange % n_in) - 1
        else:
            out_degrees = jnp.arange(dim_list[i + 1]) % (n_in - 1)
        masks[i] = (out_degrees[:, None] >= in_degrees[None, :]).astype(jnp.float32)
    return masks


def _linear_weight(key, out_f, in_f):
    # nn.Linear default: U(-1/sqrt(in_f), 1/sqrt(in_f))
    bound = 1.0 / math.sqrt(in_f)
    return jax.random.uniform(key, (out_f, in_f), jnp.float32, -bound, bound)


def build_made_params(key, n_in, n_out, sizes, cond_dim):
    assert len(sizes) == 2, "kernel hard-codes the [n_in, H, H, 2*n_out] topology"
    n_out_total = 2 * n_out  # mixture=None
    dim_list = [n_in, *sizes, n_out_total]
    masks = make_masks(n_in, dim_list)

    k0, kc, k1, k2 = jax.random.split(key, 4)
    w0 = _linear_weight(k0, dim_list[1], dim_list[0])      # pre
    b0 = jnp.zeros((1, dim_list[1]), jnp.float32)          # nn.init.zeros_(bias)
    wc = _linear_weight(kc, dim_list[1], cond_dim)         # conditional (no bias)
    w1 = _linear_weight(k1, dim_list[2], dim_list[1])      # hidden masked layer
    b1 = jnp.zeros((1, dim_list[2]), jnp.float32)
    w2 = _linear_weight(k2, dim_list[3], dim_list[2])      # final masked layer
    b2 = jnp.zeros((1, dim_list[3]), jnp.float32)

    return (w0, masks[0], b0, wc, w1, masks[1], b1, w2, masks[2], b2)


def made_forward_ref(x, x_cond, params):
    """Pure-JAX reference on the *unfused* parameters (PyTorch semantics)."""
    (w0, m0, b0, wc, w1, m1, b1, w2, m2, b2) = params
    h = x @ (m0 * w0).T + b0 + x_cond @ wc.T
    h = _gelu_exact(h)
    h = _gelu_exact(h @ (m1 * w1).T + b1)
    return h @ (m2 * w2).T + b2


# ----------------------------------------------------------------------------
if __name__ == "__main__":
    # Shapes consistent with the module's forward:
    #   X: (B, n_in), X_cond: (B, cond_dim), output: (B, 2*n_out)
    # B chosen so the kernel exercises multiple grid steps + batch padding.
    B, n_in, n_out, cond_dim = 200, 8, 8, 4
    sizes = [32, 32]

    key = jax.random.PRNGKey(0)
    kx, kc, kp = jax.random.split(key, 3)
    x = jax.random.normal(kx, (B, n_in), jnp.float32)
    x_cond = jax.random.normal(kc, (B, cond_dim), jnp.float32)
    params = build_made_params(kp, n_in, n_out, sizes, cond_dim)

    # Host-side constant folding (mask*W, transpose, split cond layer).
    fused = fuse_made_params(params)  # f32 weights -> bit-tight vs reference

    out = made_forward(x, x_cond, fused, tile_b=4096, approx_gelu=False)
    out = jax.block_until_ready(out)

    ref = made_forward_ref(x, x_cond, params)
    assert out.shape == (B, 2 * n_out)
    assert jnp.allclose(out, ref, rtol=1e-4, atol=1e-4), "mismatch vs JAX reference"

    print("KERNEL_OK")
</pallas_src>

<mosaic_0001>
module attributes {stable_mosaic.version = 11 : i64} {
  func.func @_made_kernel(%arg0: i32, %arg1: memref<104x8xf32, #tpu.memory_space<vmem>>, %arg2: memref<104x4xf32, #tpu.memory_space<vmem>>, %arg3: memref<8x32xf32, #tpu.memory_space<vmem>>, %arg4: memref<4x32xf32, #tpu.memory_space<vmem>>, %arg5: memref<1x32xf32, #tpu.memory_space<vmem>>, %arg6: memref<32x32xf32, #tpu.memory_space<vmem>>, %arg7: memref<1x32xf32, #tpu.memory_space<vmem>>, %arg8: memref<32x16xf32, #tpu.memory_space<vmem>>, %arg9: memref<1x16xf32, #tpu.memory_space<vmem>>, %arg10: memref<104x16xf32, #tpu.memory_space<vmem>>) attributes {dimension_semantics = [#tpu.dimension_semantics<parallel>], iteration_bounds = array<i64: 2>, scalar_prefetch = 0 : i64, scratch_operands = 0 : i64, tpu.core_type = #tpu.core_type<tc>, window_params = [{transform_indices = @transform_0, window_bounds = array<i64: 104, 8>}, {transform_indices = @transform_1, window_bounds = array<i64: 104, 4>}, {pipeline_mode = #tpu.pipeline_mode<synchronous>, transform_indices = @transform_2, window_bounds = array<i64: 8, 32>}, {pipeline_mode = #tpu.pipeline_mode<synchronous>, transform_indices = @transform_3, window_bounds = array<i64: 4, 32>}, {pipeline_mode = #tpu.pipeline_mode<synchronous>, transform_indices = @transform_4, window_bounds = array<i64: 1, 32>}, {pipeline_mode = #tpu.pipeline_mode<synchronous>, transform_indices = @transform_5, window_bounds = array<i64: 32, 32>}, {pipeline_mode = #tpu.pipeline_mode<synchronous>, transform_indices = @transform_6, window_bounds = array<i64: 1, 32>}, {pipeline_mode = #tpu.pipeline_mode<synchronous>, transform_indices = @transform_7, window_bounds = array<i64: 32, 16>}, {pipeline_mode = #tpu.pipeline_mode<synchronous>, transform_indices = @transform_8, window_bounds = array<i64: 1, 16>}, {transform_indices = @transform_9, window_bounds = array<i64: 104, 16>}]} {
    %c0 = arith.constant 0 : index
    %c0_0 = arith.constant 0 : index
    %0 = vector.load %arg1[%c0, %c0_0] : memref<104x8xf32, #tpu.memory_space<vmem>>, vector<104x8xf32>
    %c0_1 = arith.constant 0 : index
    %c0_2 = arith.constant 0 : index
    %1 = vector.load %arg3[%c0_1, %c0_2] : memref<8x32xf32, #tpu.memory_space<vmem>>, vector<8x32xf32>
    %cst = arith.constant dense<0.000000e+00> : vector<104x32xf32>
    %2 = tpu.matmul %0, %1, %cst {dimension_numbers = #tpu.dot_dimension_numbers<[1], [0], [0], [1], [0, 0, 1, 1], [], []>} : vector<104x8xf32>, vector<8x32xf32>, vector<104x32xf32> -> vector<104x32xf32>
    %c0_3 = arith.constant 0 : index
    %c0_4 = arith.constant 0 : index
    %3 = vector.load %arg2[%c0_3, %c0_4] : memref<104x4xf32, #tpu.memory_space<vmem>>, vector<104x4xf32>
    %c0_5 = arith.constant 0 : index
    %c0_6 = arith.constant 0 : index
    %4 = vector.load %arg4[%c0_5, %c0_6] : memref<4x32xf32, #tpu.memory_space<vmem>>, vector<4x32xf32>
    %cst_7 = arith.constant dense<0.000000e+00> : vector<104x32xf32>
    %5 = tpu.matmul %3, %4, %cst_7 {dimension_numbers = #tpu.dot_dimension_numbers<[1], [0], [0], [1], [0, 0, 1, 1], [], []>} : vector<104x4xf32>, vector<4x32xf32>, vector<104x32xf32> -> vector<104x32xf32>
    %6 = arith.addf %2, %5 : vector<104x32xf32>
    %c0_8 = arith.constant 0 : index
    %c0_9 = arith.constant 0 : index
    %7 = vector.load %arg5[%c0_8, %c0_9] : memref<1x32xf32, #tpu.memory_space<vmem>>, vector<1x32xf32>
    %8 = vector.broadcast %7 : vector<1x32xf32> to vector<104x32xf32>
    %9 = arith.addf %6, %8 : vector<104x32xf32>
    %cst_10 = arith.constant 5.000000e-01 : f32
    %10 = vector.broadcast %cst_10 : f32 to vector<104x32xf32>
    %11 = arith.mulf %10, %9 : vector<104x32xf32>
    %cst_11 = arith.constant 0.707106769 : f32
    %12 = vector.broadcast %cst_11 : f32 to vector<104x32xf32>
    %13 = arith.mulf %9, %12 : vector<104x32xf32>
    %14 = math.erf %13 : vector<104x32xf32>
    %cst_12 = arith.constant 1.000000e+00 : f32
    %15 = vector.broadcast %cst_12 : f32 to vector<104x32xf32>
    %16 = arith.addf %15, %14 : vector<104x32xf32>
    %17 = arith.mulf %11, %16 : vector<104x32xf32>
    %c0_13 = arith.constant 0 : index
    %c0_14 = arith.constant 0 : index
    %18 = vector.load %arg6[%c0_13, %c0_14] : memref<32x32xf32, #tpu.memory_space<vmem>>, vector<32x32xf32>
    %cst_15 = arith.constant dense<0.000000e+00> : vector<104x32xf32>
    %19 = tpu.matmul %17, %18, %cst_15 {dimension_numbers = #tpu.dot_dimension_numbers<[1], [0], [0], [1], [0, 0, 1, 1], [], []>} : vector<104x32xf32>, vector<32x32xf32>, vector<104x32xf32> -> vector<104x32xf32>
    %c0_16 = arith.constant 0 : index
    %c0_17 = arith.constant 0 : index
    %20 = vector.load %arg7[%c0_16, %c0_17] : memref<1x32xf32, #tpu.memory_space<vmem>>, vector<1x32xf32>
    %21 = vector.broadcast %20 : vector<1x32xf32> to vector<104x32xf32>
    %22 = arith.addf %19, %21 : vector<104x32xf32>
    %cst_18 = arith.constant 5.000000e-01 : f32
    %23 = vector.broadcast %cst_18 : f32 to vector<104x32xf32>
    %24 = arith.mulf %23, %22 : vector<104x32xf32>
    %cst_19 = arith.constant 0.707106769 : f32
    %25 = vector.broadcast %cst_19 : f32 to vector<104x32xf32>
    %26 = arith.mulf %22, %25 : vector<104x32xf32>
    %27 = math.erf %26 : vector<104x32xf32>
    %cst_20 = arith.constant 1.000000e+00 : f32
    %28 = vector.broadcast %cst_20 : f32 to vector<104x32xf32>
    %29 = arith.addf %28, %27 : vector<104x32xf32>
    %30 = arith.mulf %24, %29 : vector<104x32xf32>
    %c0_21 = arith.constant 0 : index
    %c0_22 = arith.constant 0 : index
    %31 = vector.load %arg8[%c0_21, %c0_22] : memref<32x16xf32, #tpu.memory_space<vmem>>, vector<32x16xf32>
    %cst_23 = arith.constant dense<0.000000e+00> : vector<104x16xf32>
    %32 = tpu.matmul %30, %31, %cst_23 {dimension_numbers = #tpu.dot_dimension_numbers<[1], [0], [0], [1], [0, 0, 1, 1], [], []>} : vector<104x32xf32>, vector<32x16xf32>, vector<104x16xf32> -> vector<104x16xf32>
    %c0_24 = arith.constant 0 : index
    %c0_25 = arith.constant 0 : index
    %33 = vector.load %arg9[%c0_24, %c0_25] : memref<1x16xf32, #tpu.memory_space<vmem>>, vector<1x16xf32>
    %34 = vector.broadcast %33 : vector<1x16xf32> to vector<104x16xf32>
    %35 = arith.addf %32, %34 : vector<104x16xf32>
    %c0_26 = arith.constant 0 : index
    %c0_27 = arith.constant 0 : index
    %36 = vector.load %arg10[%c0_26, %c0_27] : memref<104x16xf32, #tpu.memory_space<vmem>>, vector<104x16xf32>
    tpu.vector_store %arg10[%c0_26, %c0_27], %35 {strides = array<i32>} : memref<104x16xf32, #tpu.memory_space<vmem>>, vector<104x16xf32>,
    return
  }
  func.func @transform_0(%arg0: i32) -> (i32, i32) {
    %c0_i32 = arith.constant 0 : i32
    %c0_i32_0 = arith.constant 0 : i32
    return %arg0, %c0_i32 : i32, i32
  }
  func.func @transform_1(%arg0: i32) -> (i32, i32) {
    %c0_i32 = arith.constant 0 : i32
    %c0_i32_0 = arith.constant 0 : i32
    return %arg0, %c0_i32 : i32, i32
  }
  func.func @transform_2(%arg0: i32) -> (i32, i32) {
    %c0_i32 = arith.constant 0 : i32
    %c0_i32_0 = arith.constant 0 : i32
    %c0_i32_1 = arith.constant 0 : i32
    return %c0_i32, %c0_i32_0 : i32, i32
  }
  func.func @transform_3(%arg0: i32) -> (i32, i32) {
    %c0_i32 = arith.constant 0 : i32
    %c0_i32_0 = arith.constant 0 : i32
    %c0_i32_1 = arith.constant 0 : i32
    return %c0_i32, %c0_i32_0 : i32, i32
  }
  func.func @transform_4(%arg0: i32) -> (i32, i32) {
    %c0_i32 = arith.constant 0 : i32
    %c0_i32_0 = arith.constant 0 : i32
    %c0_i32_1 = arith.constant 0 : i32
    return %c0_i32, %c0_i32_0 : i32, i32
  }
  func.func @transform_5(%arg0: i32) -> (i32, i32) {
    %c0_i32 = arith.constant 0 : i32
    %c0_i32_0 = arith.constant 0 : i32
    %c0_i32_1 = arith.constant 0 : i32
    return %c0_i32, %c0_i32_0 : i32, i32
  }
  func.func @transform_6(%arg0: i32) -> (i32, i32) {
    %c0_i32 = arith.constant 0 : i32
    %c0_i32_0 = arith.constant 0 : i32
    %c0_i32_1 = arith.constant 0 : i32
    return %c0_i32, %c0_i32_0 : i32, i32
  }
  func.func @transform_7(%arg0: i32) -> (i32, i32) {
    %c0_i32 = arith.constant 0 : i32
    %c0_i32_0 = arith.constant 0 : i32
    %c0_i32_1 = arith.constant 0 : i32
    return %c0_i32, %c0_i32_0 : i32, i32
  }
  func.func @transform_8(%arg0: i32) -> (i32, i32) {
    %c0_i32 = arith.constant 0 : i32
    %c0_i32_0 = arith.constant 0 : i32
    %c0_i32_1 = arith.constant 0 : i32
    return %c0_i32, %c0_i32_0 : i32, i32
  }
  func.func @transform_9(%arg0: i32) -> (i32, i32) {
    %c0_i32 = arith.constant 0 : i32
    %c0_i32_0 = arith.constant 0 : i32
    return %arg0, %c0_i32 : i32, i32
  }
}

</mosaic_0001>

<llo_original>
// kernel: tpu_custom_call.1
$region0: #{tpu_custom_call.1}
  #allocation0 [shape = 'u32[]', space=smem, size = 0x4, offset = 0x4, fixed_abs, tag = 'smem constant byte address 0x4 - core index']
  #allocation1 [shape = 'u32[144,128]{1,0:T(1,128)}', space=vmem, size = 0x12000, scoped, tag = 'internal scratch']
  %s0 = inlined_call_operand.vmem [shape: f32[208,8], index: 0, kind: input, shape index: {}]
  %s1 = inlined_call_operand.vmem [shape: f32[208,4], index: 1, kind: input, shape index: {}]
  %s2 = inlined_call_operand.vmem [shape: f32[8,32], index: 2, kind: input, shape index: {}]
  %s3 = inlined_call_operand.vmem [shape: f32[4,32], index: 3, kind: input, shape index: {}]
  %s4 = inlined_call_operand.vmem [shape: f32[1,32], index: 4, kind: input, shape index: {}]
  %s5 = inlined_call_operand.vmem [shape: f32[32,32], index: 5, kind: input, shape index: {}]
  %s6 = inlined_call_operand.vmem [shape: f32[1,32], index: 6, kind: input, shape index: {}]
  %s7 = inlined_call_operand.vmem [shape: f32[32,16], index: 7, kind: input, shape index: {}]
  %s8 = inlined_call_operand.vmem [shape: f32[1,16], index: 8, kind: input, shape index: {}]
  %s9 = inlined_call_operand.vmem [shape: f32[208,16], index: 9, kind: output, shape index: {}]
  %s10 = sld [smem:[#allocation0]]
  $region69: #{tpu_custom_call.1} parent=0
    _
  %s12 = ssub.s32 1, %s10
  %s13 = scalar_select 0, %s12, %s10
  loop: start=0, step=1, limit=4
  $region2: #{tpu_custom_call.1} parent=0 // loop_pre_header
    _
  $region3: #{tpu_custom_call.1} parent=0 // loop_header
    %s15 = sphi 0, %s19
    %p16 = scmp.ge.s32.totalorder %s15, 4
    %s25 = sphi 0, %s27
    %s28 = sphi 0, %s25
    %s29 = sphi 0, %s28
    %s45 = sphi 0, %s29
    %s51 = sphi 0, %s53
    %s54 = sphi 0, %s51
    %s55 = sphi 0, %s54
    %s71 = sphi 0, %s55
    %s75 = sphi 0, %s75
    %s77 = sphi 0, %s75
    %s78 = sphi 0, %s77
    %s92 = sphi 0, %s78
    %s96 = sphi 0, %s96
    %s98 = sphi 0, %s96
    %s99 = sphi 0, %s98
    %s113 = sphi 0, %s99
    %s117 = sphi 0, %s117
    %s119 = sphi 0, %s117
    %s120 = sphi 0, %s119
    %s134 = sphi 0, %s120
    %s138 = sphi 0, %s138
    %s140 = sphi 0, %s138
    %s141 = sphi 0, %s140
    %s155 = sphi 0, %s141
    %s159 = sphi 0, %s159
    %s161 = sphi 0, %s159
    %s162 = sphi 0, %s161
    %s176 = sphi 0, %s162
    %s180 = sphi 0, %s180
    %s182 = sphi 0, %s180
    %s183 = sphi 0, %s182
    %s197 = sphi 0, %s183
    %s201 = sphi 0, %s201
    %s203 = sphi 0, %s201
    %s204 = sphi 0, %s203
    %s218 = sphi 0, %s204
    %s224 = sphi 0, %s226
    %s227 = sphi 0, %s224
    %s228 = sphi 0, %s227
    %s244 = sphi 0, %s228
  $region4: #{tpu_custom_call.1} parent=0 // loop_header_branch
    %18 = sbr.rel (%p16) target = $region8
  $region5: #{tpu_custom_call.1} parent=0 // loop_body
    %s20 = ssub.s32 %s15, 1
    %s21 = ssub.s32 %s15, 2
    %s22 = sadd.s32 %s15, 1
    %s23 = ssub.s32 %s15, %s22
    %p24 = scmp.eq.s32.totalorder %s23, 0
    %s26 = sadd.s32 %s25, 1
    %s27 = scalar_select %p24, %s25, %s26
    %p30 = pneg %p24
    %p31 = scmp.eq.s32.totalorder %s15, 1
    %p32 = por %p30, %p31
    %p33 = scmp.ne.s32.totalorder %s25, %s28
    %p34 = scmp.eq.s32.totalorder %s15, 0
    %p35 = por %p33, %p34
    %p36 = scmp.ne.s32.totalorder %s25, %s28
    %p37 = scmp.eq.s32.totalorder %s20, 1
    %p38 = por %p36, %p37
    %p39 = scmp.ne.s32.totalorder %s28, %s29
    %p40 = scmp.eq.s32.totalorder %s20, 0
    %p41 = por %p39, %p40
    %p42 = scmp.ne.s32.totalorder %s28, %s29
    %p43 = scmp.eq.s32.totalorder %s21, 1
    %p44 = por %p42, %p43
    %p46 = scmp.ne.s32.totalorder %s29, %s45
    %p47 = scmp.eq.s32.totalorder %s21, 0
    %p48 = por %p46, %p47
    %s49 = ssub.s32 %s15, %s22
    %p50 = scmp.eq.s32.totalorder %s49, 0
    %s52 = sadd.s32 %s51, 1
    %s53 = scalar_select %p50, %s51, %s52
    %p56 = pneg %p50
    %p57 = scmp.eq.s32.totalorder %s15, 1
    %p58 = por %p56, %p57
    %p59 = scmp.ne.s32.totalorder %s51, %s54
    %p60 = scmp.eq.s32.totalorder %s15, 0
    %p61 = por %p59, %p60
    %p62 = scmp.ne.s32.totalorder %s51, %s54
    %p63 = scmp.eq.s32.totalorder %s20, 1
    %p64 = por %p62, %p63
    %p65 = scmp.ne.s32.totalorder %s54, %s55
    %p66 = scmp.eq.s32.totalorder %s20, 0
    %p67 = por %p65, %p66
    %p68 = scmp.ne.s32.totalorder %s54, %s55
    %p69 = scmp.eq.s32.totalorder %s21, 1
    %p70 = por %p68, %p69
    %p72 = scmp.ne.s32.totalorder %s55, %s71
    %p73 = scmp.eq.s32.totalorder %s21, 0
    %p74 = por %p72, %p73
    %s76 = sadd.s32 %s75, 1
    %p79 = scmp.eq.s32.totalorder %s15, 1
    %p80 = scmp.ne.s32.totalorder %s75, %s77
    %p81 = scmp.eq.s32.totalorder %s15, 0
    %p82 = por %p80, %p81
    %p83 = scmp.ne.s32.totalorder %s75, %s77
    %p84 = scmp.eq.s32.totalorder %s20, 1
    %p85 = por %p83, %p84
    %p86 = scmp.ne.s32.totalorder %s77, %s78
    %p87 = scmp.eq.s32.totalorder %s20, 0
    %p88 = por %p86, %p87
    %p89 = scmp.ne.s32.totalorder %s77, %s78
    %p90 = scmp.eq.s32.totalorder %s21, 1
    %p91 = por %p89, %p90
    %p93 = scmp.ne.s32.totalorder %s78, %s92
    %p94 = scmp.eq.s32.totalorder %s21, 0
    %p95 = por %p93, %p94
    %s97 = sadd.s32 %s96, 1
    %p100 = scmp.eq.s32.totalorder %s15, 1
    %p101 = scmp.ne.s32.totalorder %s96, %s98
    %p102 = scmp.eq.s32.totalorder %s15, 0
    %p103 = por %p101, %p102
    %p104 = scmp.ne.s32.totalorder %s96, %s98
    %p105 = scmp.eq.s32.totalorder %s20, 1
    %p106 = por %p104, %p105
    %p107 = scmp.ne.s32.totalorder %s98, %s99
    %p108 = scmp.eq.s32.totalorder %s20, 0
    %p109 = por %p107, %p108
    %p110 = scmp.ne.s32.totalorder %s98, %s99
    %p111 = scmp.eq.s32.totalorder %s21, 1
    %p112 = por %p110, %p111
    %p114 = scmp.ne.s32.totalorder %s99, %s113
    %p115 = scmp.eq.s32.totalorder %s21, 0
    %p116 = por %p114, %p115
    %s118 = sadd.s32 %s117, 1
    %p121 = scmp.eq.s32.totalorder %s15, 1
    %p122 = scmp.ne.s32.totalorder %s117, %s119
    %p123 = scmp.eq.s32.totalorder %s15, 0
    %p124 = por %p122, %p123
    %p125 = scmp.ne.s32.totalorder %s117, %s119
    %p126 = scmp.eq.s32.totalorder %s20, 1
    %p127 = por %p125, %p126
    %p128 = scmp.ne.s32.totalorder %s119, %s120
    %p129 = scmp.eq.s32.totalorder %s20, 0
    %p130 = por %p128, %p129
    %p131 = scmp.ne.s32.totalorder %s119, %s120
    %p132 = scmp.eq.s32.totalorder %s21, 1
    %p133 = por %p131, %p132
    %p135 = scmp.ne.s32.totalorder %s120, %s134
    %p136 = scmp.eq.s32.totalorder %s21, 0
    %p137 = por %p135, %p136
    %s139 = sadd.s32 %s138, 1
    %p142 = scmp.eq.s32.totalorder %s15, 1
    %p143 = scmp.ne.s32.totalorder %s138, %s140
    %p144 = scmp.eq.s32.totalorder %s15, 0
    %p145 = por %p143, %p144
    %p146 = scmp.ne.s32.totalorder %s138, %s140
    %p147 = scmp.eq.s32.totalorder %s20, 1
    %p148 = por %p146, %p147
    %p149 = scmp.ne.s32.totalorder %s140, %s141
    %p150 = scmp.eq.s32.totalorder %s20, 0
    %p151 = por %p149, %p150
    %p152 = scmp.ne.s32.totalorder %s140, %s141
    %p153 = scmp.eq.s32.totalorder %s21, 1
    %p154 = por %p152, %p153
    %p156 = scmp.ne.s32.totalorder %s141, %s155
    %p157 = scmp.eq.s32.totalorder %s21, 0
    %p158 = por %p156, %p157
    %s160 = sadd.s32 %s159, 1
    %p163 = scmp.eq.s32.totalorder %s15, 1
    %p164 = scmp.ne.s32.totalorder %s159, %s161
    %p165 = scmp.eq.s32.totalorder %s15, 0
    %p166 = por %p164, %p165
    %p167 = scmp.ne.s32.totalorder %s159, %s161
    %p168 = scmp.eq.s32.totalorder %s20, 1
    %p169 = por %p167, %p168
    %p170 = scmp.ne.s32.totalorder %s161, %s162
    %p171 = scmp.eq.s32.totalorder %s20, 0
    %p172 = por %p170, %p171
    %p173 = scmp.ne.s32.totalorder %s161, %s162
    %p174 = scmp.eq.s32.totalorder %s21, 1
    %p175 = por %p173, %p174
    %p177 = scmp.ne.s32.totalorder %s162, %s176
    %p178 = scmp.eq.s32.totalorder %s21, 0
    %p179 = por %p177, %p178
    %s181 = sadd.s32 %s180, 1
    %p184 = scmp.eq.s32.totalorder %s15, 1
    %p185 = scmp.ne.s32.totalorder %s180, %s182
    %p186 = scmp.eq.s32.totalorder %s15, 0
    %p187 = por %p185, %p186
    %p188 = scmp.ne.s32.totalorder %s180, %s182
    %p189 = scmp.eq.s32.totalorder %s20, 1
    %p190 = por %p188, %p189
    %p191 = scmp.ne.s32.totalorder %s182, %s183
    %p192 = scmp.eq.s32.totalorder %s20, 0
    %p193 = por %p191, %p192
    %p194 = scmp.ne.s32.totalorder %s182, %s183
    %p195 = scmp.eq.s32.totalorder %s21, 1
    %p196 = por %p194, %p195
    %p198 = scmp.ne.s32.totalorder %s183, %s197
    %p199 = scmp.eq.s32.totalorder %s21, 0
    %p200 = por %p198, %p199
    %s202 = sadd.s32 %s201, 1
    %p205 = scmp.eq.s32.totalorder %s15, 1
    %p206 = scmp.ne.s32.totalorder %s201, %s203
    %p207 = scmp.eq.s32.totalorder %s15, 0
    %p208 = por %p206, %p207
    %p209 = scmp.ne.s32.totalorder %s201, %s203
    %p210 = scmp.eq.s32.totalorder %s20, 1
    %p211 = por %p209, %p210
    %p212 = scmp.ne.s32.totalorder %s203, %s204
    %p213 = scmp.eq.s32.totalorder %s20, 0
    %p214 = por %p212, %p213
    %p215 = scmp.ne.s32.totalorder %s203, %s204
    %p216 = scmp.eq.s32.totalorder %s21, 1
    %p217 = por %p215, %p216
    %p219 = scmp.ne.s32.totalorder %s204, %s218
    %p220 = scmp.eq.s32.totalorder %s21, 0
    %p221 = por %p219, %p220
    %s222 = ssub.s32 %s15, %s22
    %p223 = scmp.eq.s32.totalorder %s222, 0
    %s225 = sadd.s32 %s224, 1
    %s226 = scalar_select %p223, %s224, %s225
    %p229 = pneg %p223
    %p230 = scmp.eq.s32.totalorder %s15, 1
    %p231 = por %p229, %p230
    %p232 = scmp.ne.s32.totalorder %s224, %s227
    %p233 = scmp.eq.s32.totalorder %s15, 0
    %p234 = por %p232, %p233
    %p235 = scmp.ne.s32.totalorder %s224, %s227
    %p236 = scmp.eq.s32.totalorder %s20, 1
    %p237 = por %p235, %p236
    %p238 = scmp.ne.s32.totalorder %s227, %s228
    %p239 = scmp.eq.s32.totalorder %s20, 0
    %p240 = por %p238, %p239
    %p241 = scmp.ne.s32.totalorder %s227, %s228
    %p242 = scmp.eq.s32.totalorder %s21, 1
    %p243 = por %p241, %p242
    %p245 = scmp.ne.s32.totalorder %s228, %s244
    %p246 = scmp.eq.s32.totalorder %s21, 0
    %p247 = por %p245, %p246
    %p248 = scmp.le.s32.totalorder 1, %s15
    %p249 = scmp.lt.s32.totalorder %s15, 3
    %p250 = pnand %p248, %p249
    %p251 = pneg %p250
    // Predicated region
    $region9: #{tpu_custom_call.1} parent=5 // pred_check
      _
    $region10: #{tpu_custom_call.1} parent=5 // pred_check_branch
      %253 = sbr.rel (%p250) target = $region12
    $region11: #{tpu_custom_call.1} parent=5 // pred_region
      %s254 = ssub.s32 %s15, 1
      // Predicated region
      $region13: #{tpu_custom_call.1} parent=11 // pred_check
        %p255 = pneg %p88
      $region14: #{tpu_custom_call.1} parent=11 // pred_check_branch
        %257 = sbr.rel (%p255) target = $region16
      $region15: #{tpu_custom_call.1} parent=11 // pred_region
        _
      $region16: #{tpu_custom_call.1} parent=11 // pred_fallthru
        _
      // Predicated region
      $region17: #{tpu_custom_call.1} parent=11 // pred_check
        %p258 = pneg %p109
      $region18: #{tpu_custom_call.1} parent=11 // pred_check_branch
        %260 = sbr.rel (%p258) target = $region20
      $region19: #{tpu_custom_call.1} parent=11 // pred_region
        _
      $region20: #{tpu_custom_call.1} parent=11 // pred_fallthru
        _
      // Predicated region
      $region21: #{tpu_custom_call.1} parent=11 // pred_check
        %p261 = pneg %p130
      $region22: #{tpu_custom_call.1} parent=11 // pred_check_branch
        %263 = sbr.rel (%p261) target = $region24
      $region23: #{tpu_custom_call.1} parent=11 // pred_region
        _
      $region24: #{tpu_custom_call.1} parent=11 // pred_fallthru
        _
      // Predicated region
      $region25: #{tpu_custom_call.1} parent=11 // pred_check
        %p264 = pneg %p151
      $region26: #{tpu_custom_call.1} parent=11 // pred_check_branch
        %266 = sbr.rel (%p264) target = $region28
      $region27: #{tpu_custom_call.1} parent=11 // pred_region
        _
      $region28: #{tpu_custom_call.1} parent=11 // pred_fallthru
        _
      // Predicated region
      $region29: #{tpu_custom_call.1} parent=11 // pred_check
        %p267 = pneg %p172
      $region30: #{tpu_custom_call.1} parent=11 // pred_check_branch
        %269 = sbr.rel (%p267) target = $region32
      $region31: #{tpu_custom_call.1} parent=11 // pred_region
        _
      $region32: #{tpu_custom_call.1} parent=11 // pred_fallthru
        _
      // Predicated region
      $region33: #{tpu_custom_call.1} parent=11 // pred_check
        %p270 = pneg %p193
      $region34: #{tpu_custom_call.1} parent=11 // pred_check_branch
        %272 = sbr.rel (%p270) target = $region36
      $region35: #{tpu_custom_call.1} parent=11 // pred_region
        _
      $region36: #{tpu_custom_call.1} parent=11 // pred_fallthru
        _
      // Predicated region
      $region37: #{tpu_custom_call.1} parent=11 // pred_check
        %p273 = pneg %p214
      $region38: #{tpu_custom_call.1} parent=11 // pred_check_branch
        %275 = sbr.rel (%p273) target = $region40
      $region39: #{tpu_custom_call.1} parent=11 // pred_region
        _
      $region40: #{tpu_custom_call.1} parent=11 // pred_fallthru
        _
    $region12: #{tpu_custom_call.1} parent=5 // pred_fallthru
      _
    %p276 = scmp.lt.s32.totalorder %s15, 2
    // Predicated region
    $region41: #{tpu_custom_call.1} parent=5 // pred_check
      %p277 = pneg %p276
    $region42: #{tpu_custom_call.1} parent=5 // pred_check_branch
      %279 = sbr.rel (%p277) target = $region44
    $region43: #{tpu_custom_call.1} parent=5 // pred_region
      // Predicated region
      $region45: #{tpu_custom_call.1} parent=43 // pred_check
        %p280 = pneg %p35
      $region46: #{tpu_custom_call.1} parent=43 // pred_check_branch
        %282 = sbr.rel (%p280) target = $region48
      $region47: #{tpu_custom_call.1} parent=43 // pred_region
        %s283 = smul.u32 13, %s15
        %p284 = scmp.lt.s32.totalorder %s283, 25
        %s285 = scalar_select %p284, %s283, 25
        %s286 = smul.addr %s285, 8
        %s287 = scalar_lea.vmem %s0, %s286
        %s288 = smul.u32 13, %s15
      $region48: #{tpu_custom_call.1} parent=43 // pred_fallthru
        _
      // Predicated region
      $region49: #{tpu_custom_call.1} parent=43 // pred_check
        %p289 = pneg %p61
      $region50: #{tpu_custom_call.1} parent=43 // pred_check_branch
        %291 = sbr.rel (%p289) target = $region52
      $region51: #{tpu_custom_call.1} parent=43 // pred_region
        %s292 = smul.u32 13, %s15
        %p293 = scmp.lt.s32.totalorder %s292, 25
        %s294 = scalar_select %p293, %s292, 25
        %s295 = smul.addr %s294, 8
        %s296 = scalar_lea.vmem %s1, %s295
        %s297 = smul.u32 13, %s15
      $region52: #{tpu_custom_call.1} parent=43 // pred_fallthru
        _
    $region44: #{tpu_custom_call.1} parent=5 // pred_fallthru
      _
    %p298 = scmp.le.s32.totalorder 1, %s15
    %p299 = scmp.lt.s32.totalorder %s15, 3
    %p300 = pnand %p298, %p299
    %p301 = pneg %p300
    // Predicated region
    $region53: #{tpu_custom_call.1} parent=5 // pred_check
      _
    $region54: #{tpu_custom_call.1} parent=5 // pred_check_branch
      %303 = sbr.rel (%p300) target = $region56
    $region55: #{tpu_custom_call.1} parent=5 // pred_region
      %s304 = ssub.s32 %s15, 1
      %s305 = smul.u32 13, %s20
      %p306 = scmp.lt.s32.totalorder %s305, 25
      %s307 = scalar_select %p306, %s305, 25
      %s308 = smul.addr %s307, 8
      %s309 = scalar_lea.vmem %s0, %s308
      %p310 = pneg %p41
      %p311 = pneg %p38
      %s312 = smul.u32 13, %s20
      %p313 = scmp.lt.s32.totalorder %s312, 25
      %s314 = scalar_select %p313, %s312, 25
      %s315 = smul.addr %s314, 8
      %s316 = scalar_lea.vmem %s1, %s315
      %p317 = pneg %p67
      %p318 = pneg %p64
      %p319 = pneg %p88
      %p320 = pneg %p85
      %p321 = pneg %p109
      %p322 = pneg %p106
      %p323 = pneg %p130
      %p324 = pneg %p127
      %p325 = pneg %p151
      %p326 = pneg %p148
      %p327 = pneg %p172
      %p328 = pneg %p169
      %p329 = pneg %p193
      %p330 = pneg %p190
      %p331 = pneg %p214
      %p332 = pneg %p211
      %p333 = pneg %p240
      %p334 = pneg %p237
      %s335 = smul.u32 13, %s20
      %p336 = scmp.lt.s32.totalorder %s335, 25
      %s337 = scalar_select %p336, %s335, 25
      %s338 = smul.addr %s337, 8
      %s339 = scalar_lea.vmem %s9, %s338
      %s340 = smul.u32 13, %s20
      %p341 = scmp.lt.s32.totalorder %s340, 25
      %s342 = scalar_select %p341, %s340, 25
      %s343 = smul.addr %s342, 8
      %s344 = scalar_lea.vmem %s0, %s343
      %s345 = smul.u32 13, %s20
      %s346 = smul.u32 13, %s20
      %p347 = scmp.lt.s32.totalorder %s346, 25
      %s348 = scalar_select %p347, %s346, 25
      %s349 = smul.addr %s348, 8
      %s350 = scalar_lea.vmem %s1, %s349
      %s351 = smul.u32 13, %s20
      %s352 = smul.u32 13, %s20
      %p353 = scmp.lt.s32.totalorder %s352, 25
      %s354 = scalar_select %p353, %s352, 25
      %s355 = smul.addr %s354, 8
      %s356 = scalar_lea.vmem %s9, %s355
      %s357 = smul.u32 13, %s20
      %v358 = vld [vmem:[%s344] sm:$0xff]
      %v359 = vld [vmem:[%s344 + $0x8] sm:$0xff]
      %v360 = vld [vmem:[%s344 + $0x10] sm:$0xff]
      %v361 = vld [vmem:[%s344 + $0x18] sm:$0xff]
      %v362 = vld [vmem:[%s344 + $0x20] sm:$0xff]
      %v363 = vld [vmem:[%s344 + $0x28] sm:$0xff]
      %v364 = vld [vmem:[%s344 + $0x30] sm:$0xff]
      %v365 = vld [vmem:[%s344 + $0x38] sm:$0xff]
      %v366 = vld [vmem:[%s344 + $0x40] sm:$0xff]
      %v367 = vld [vmem:[%s344 + $0x48] sm:$0xff]
      %v368 = vld [vmem:[%s344 + $0x50] sm:$0xff]
      %v369 = vld [vmem:[%s344 + $0x58] sm:$0xff]
      %v370 = vld [vmem:[%s344 + $0x60] sm:$0xff]
      %v371 = vld [vmem:[%s2] sm:$0xff]
      %v372 = vld [vmem:[%s350] sm:$0xff]
      %v373 = vld [vmem:[%s350 + $0x8] sm:$0xff]
      %v374 = vld [vmem:[%s350 + $0x10] sm:$0xff]
      %v375 = vld [vmem:[%s350 + $0x18] sm:$0xff]
      %v376 = vld [vmem:[%s350 + $0x20] sm:$0xff]
      %v377 = vld [vmem:[%s350 + $0x28] sm:$0xff]
      %v378 = vld [vmem:[%s350 + $0x30] sm:$0xff]
      %v379 = vld [vmem:[%s350 + $0x38] sm:$0xff]
      %v380 = vld [vmem:[%s350 + $0x40] sm:$0xff]
      %v381 = vld [vmem:[%s350 + $0x48] sm:$0xff]
      %v382 = vld [vmem:[%s350 + $0x50] sm:$0xff]
      %v383 = vld [vmem:[%s350 + $0x58] sm:$0xff]
      %v384 = vld [vmem:[%s350 + $0x60] sm:$0xff]
      %v385 = vld [vmem:[%s3] sm:$0xf]
      %vm386 = vcmask 31744
      %v388 = vsel %vm386, %v372, 0
      %v391 = vsel %vm386, %v373, 0
      %v394 = vsel %vm386, %v374, 0
      %v397 = vsel %vm386, %v375, 0
      %v400 = vsel %vm386, %v376, 0
      %v403 = vsel %vm386, %v377, 0
      %v406 = vsel %vm386, %v378, 0
      %v409 = vsel %vm386, %v379, 0
      %v412 = vsel %vm386, %v380, 0
      %v415 = vsel %vm386, %v381, 0
      %v418 = vsel %vm386, %v382, 0
      %v421 = vsel %vm386, %v383, 0
      %v424 = vsel %vm386, %v384, 0
      %vm426 = vcmask 1043456
      %v428 = vsel %vm426, %v385, 0
      %430 = vmatprep.subr.mxu0 0.0
      %431 = vmatpush1.msra.mxu0 %v428
      %432 = vmatprep.subr.mxu0 0.0
      %433 = vmatpush1.msra.mxu0 0.0
      %434 = vmatprep.subr.mxu0 0.0
      %435 = vmatpush1.msra.mxu0 0.0
      %436 = vmatprep.subr.mxu0 0.0
      %437 = vmatpush1.msra.mxu0 0.0
      %438 = vmatprep.subr.mxu0 0.0
      %439 = vmatpush1.msra.mxu0 0.0
      %440 = vmatprep.subr.mxu0 0.0
      %441 = vmatpush1.msra.mxu0 0.0
      %442 = vmatprep.subr.mxu0 0.0
      %443 = vmatpush1.msra.mxu0 0.0
      %444 = vmatprep.subr.mxu0 0.0
      %445 = vmatpush1.msra.mxu0 0.0
      %446 = vmatprep.subr.mxu0 0.0
      %447 = vmatpush1.msra.mxu0 0.0
      %448 = vmatprep.subr.mxu0 0.0
      %449 = vmatpush1.msra.mxu0 0.0
      %450 = vmatprep.subr.mxu0 0.0
      %451 = vmatpush1.msra.mxu0 0.0
      %452 = vmatprep.subr.mxu0 0.0
      %453 = vmatpush1.msra.mxu0 0.0
      %454 = vmatprep.subr.mxu0 0.0
      %455 = vmatpush1.msra.mxu0 0.0
      %456 = vmatprep.subr.mxu0 0.0
      %457 = vmatpush1.msra.mxu0 0.0
      %458 = vmatprep.subr.mxu0 0.0
      %459 = vmatpush1.msra.mxu0 0.0
      %460 = vmatprep.subr.mxu0 0.0
      %461 = vmatpush1.msra.mxu0 0.0
      %462 = vmatprep.subr.mxu0 0.0
      %463 = vmatpush1.msra.mxu0 0.0
      %464 = vmatprep.subr.mxu0 0.0
      %465 = vmatpush1.msra.mxu0 0.0
      %466 = vmatprep.subr.mxu0 0.0
      %467 = vmatpush1.msra.mxu0 0.0
      %468 = vmatprep.subr.mxu0 0.0
      %469 = vmatpush1.msra.mxu0 0.0
      %470 = vmatprep.subr.mxu0 0.0
      %471 = vmatpush1.msra.mxu0 0.0
      %472 = vmatprep.subr.mxu0 0.0
      %473 = vmatpush1.msra.mxu0 0.0
      %474 = vmatprep.subr.mxu0 0.0
      %475 = vmatpush1.msra.mxu0 0.0
      %476 = vmatprep.subr.mxu0 0.0
      %477 = vmatpush1.msra.mxu0 0.0
      %478 = vmatprep.subr.mxu0 0.0
      %479 = vmatpush1.msra.mxu0 0.0
      %480 = vmatprep.subr.mxu0 0.0
      %481 = vmatpush1.msra.mxu0 0.0
      %482 = vmatprep.subr.mxu0 0.0
      %483 = vmatpush1.msra.mxu0 0.0
      %484 = vmatprep.subr.mxu0 0.0
      %485 = vmatpush1.msra.mxu0 0.0
      %486 = vmatprep.subr.mxu0 0.0
      %487 = vmatpush1.msra.mxu0 0.0
      %488 = vmatprep.subr.mxu0 0.0
      %489 = vmatpush1.msra.mxu0 0.0
      %490 = vmatprep.subr.mxu0 0.0
      %491 = vmatpush1.msra.mxu0 0.0
      %492 = vmatprep.subr.mxu0 0.0
      %493 = vmatpush1.msra.mxu0 0.0
      %494 = vmatprep.mubr.f32.mxu0 0.0
      %495 = vmatmul.mubr.f32.gmra.mrb[0].mxu0 %v388
      %v496 = vpop.f32.mrb[0].mxu0
      %v497 = vadd.f32 0.0, %v496
      %v498 = vpop.f32.mrb[0].mxu0
      %499 = vmatprep.mubr.f32.mxu0 0.0
      %500 = vmatmul.mubr.f32.gmra.mrb[0].mxu0 %v391
      %v501 = vpop.f32.mrb[0].mxu0
      %v502 = vadd.f32 0.0, %v501
      %v503 = vpop.f32.mrb[0].mxu0
      %504 = vmatprep.mubr.f32.mxu0 0.0
      %505 = vmatmul.mubr.f32.gmra.mrb[0].mxu0 %v394
      %v506 = vpop.f32.mrb[0].mxu0
      %v507 = vadd.f32 0.0, %v506
      %v508 = vpop.f32.mrb[0].mxu0
      %509 = vmatprep.mubr.f32.mxu0 0.0
      %510 = vmatmul.mubr.f32.gmra.mrb[0].mxu0 %v397
      %v511 = vpop.f32.mrb[0].mxu0
      %v512 = vadd.f32 0.0, %v511
      %v513 = vpop.f32.mrb[0].mxu0
      %514 = vmatprep.mubr.f32.mxu0 0.0
      %515 = vmatmul.mubr.f32.gmra.mrb[0].mxu0 %v400
      %v516 = vpop.f32.mrb[0].mxu0
      %v517 = vadd.f32 0.0, %v516
      %v518 = vpop.f32.mrb[0].mxu0
      %519 = vmatprep.mubr.f32.mxu0 0.0
      %520 = vmatmul.mubr.f32.gmra.mrb[0].mxu0 %v403
      %v521 = vpop.f32.mrb[0].mxu0
      %v522 = vadd.f32 0.0, %v521
      %v523 = vpop.f32.mrb[0].mxu0
      %524 = vmatprep.mubr.f32.mxu0 0.0
      %525 = vmatmul.mubr.f32.gmra.mrb[0].mxu0 %v406
      %v526 = vpop.f32.mrb[0].mxu0
      %v527 = vadd.f32 0.0, %v526
      %v528 = vpop.f32.mrb[0].mxu0
      %529 = vmatprep.mubr.f32.mxu0 0.0
      %530 = vmatmul.mubr.f32.gmra.mrb[0].mxu0 %v409
      %v531 = vpop.f32.mrb[0].mxu0
      %v532 = vadd.f32 0.0, %v531
      %v533 = vpop.f32.mrb[0].mxu0
      %534 = vmatprep.mubr.f32.mxu0 0.0
      %535 = vmatmul.mubr.f32.gmra.mrb[0].mxu0 %v412
      %v536 = vpop.f32.mrb[0].mxu0
      %v537 = vadd.f32 0.0, %v536
      %v538 = vpop.f32.mrb[0].mxu0
      %539 = vmatprep.mubr.f32.mxu0 0.0
      %540 = vmatmul.mubr.f32.gmra.mrb[0].mxu0 %v415
      %v541 = vpop.f32.mrb[0].mxu0
      %v542 = vadd.f32 0.0, %v541
      %v543 = vpop.f32.mrb[0].mxu0
      %544 = vmatprep.mubr.f32.mxu0 0.0
      %545 = vmatmul.mubr.f32.gmra.mrb[0].mxu0 %v418
      %v546 = vpop.f32.mrb[0].mxu0
      %v547 = vadd.f32 0.0, %v546
      %v548 = vpop.f32.mrb[0].mxu0
      %549 = vmatprep.mubr.f32.mxu0 0.0
      %550 = vmatmul.mubr.f32.gmra.mrb[0].mxu0 %v421
      %v551 = vpop.f32.mrb[0].mxu0
      %v552 = vadd.f32 0.0, %v551
      %v553 = vpop.f32.mrb[0].mxu0
      %554 = vmatprep.mubr.f32.mxu0 0.0
      %555 = vmatmul.mubr.f32.gmra.mrb[0].mxu0 %v424
      %v556 = vpop.f32.mrb[0].mxu0
      %v557 = vadd.f32 0.0, %v556
      %v558 = vpop.f32.mrb[0].mxu0
      %559 = vdwg.mxu0
      %vm560 = vcmask 64512
      %v562 = vsel %vm560, %v358, 0
      %v565 = vsel %vm560, %v359, 0
      %v568 = vsel %vm560, %v360, 0
      %v571 = vsel %vm560, %v361, 0
      %v574 = vsel %vm560, %v362, 0
      %v577 = vsel %vm560, %v363, 0
      %v580 = vsel %vm560, %v364, 0
      %v583 = vsel %vm560, %v365, 0
      %v586 = vsel %vm560, %v366, 0
      %v589 = vsel %vm560, %v367, 0
      %v592 = vsel %vm560, %v368, 0
      %v595 = vsel %vm560, %v369, 0
      %v598 = vsel %vm560, %v370, 0
      %600 = vmatprep.subr.mxu0 0.0
      %601 = vmatpush1.msra.mxu0 %v371
      %602 = vmatprep.subr.mxu0 0.0
      %603 = vmatpush1.msra.mxu0 0.0
      %604 = vmatprep.subr.mxu0 0.0
      %605 = vmatpush1.msra.mxu0 0.0
      %606 = vmatprep.subr.mxu0 0.0
      %607 = vmatpush1.msra.mxu0 0.0
      %608 = vmatprep.subr.mxu0 0.0
      %609 = vmatpush1.msra.mxu0 0.0
      %610 = vmatprep.subr.mxu0 0.0
      %611 = vmatpush1.msra.mxu0 0.0
      %612 = vmatprep.subr.mxu0 0.0
      %613 = vmatpush1.msra.mxu0 0.0
      %614 = vmatprep.subr.mxu0 0.0
      %615 = vmatpush1.msra.mxu0 0.0
      %616 = vmatprep.subr.mxu0 0.0
      %617 = vmatpush1.msra.mxu0 0.0
      %618 = vmatprep.subr.mxu0 0.0
      %619 = vmatpush1.msra.mxu0 0.0
      %620 = vmatprep.subr.mxu0 0.0
      %621 = vmatpush1.msra.mxu0 0.0
      %622 = vmatprep.subr.mxu0 0.0
      %623 = vmatpush1.msra.mxu0 0.0
      %624 = vmatprep.subr.mxu0 0.0
      %625 = vmatpush1.msra.mxu0 0.0
      %626 = vmatprep.subr.mxu0 0.0
      %627 = vmatpush1.msra.mxu0 0.0
      %628 = vmatprep.subr.mxu0 0.0
      %629 = vmatpush1.msra.mxu0 0.0
      %630 = vmatprep.subr.mxu0 0.0
      %631 = vmatpush1.msra.mxu0 0.0
      %632 = vmatprep.subr.mxu0 0.0
      %633 = vmatpush1.msra.mxu0 0.0
      %634 = vmatprep.subr.mxu0 0.0
      %635 = vmatpush1.msra.mxu0 0.0
      %636 = vmatprep.subr.mxu0 0.0
      %637 = vmatpush1.msra.mxu0 0.0
      %638 = vmatprep.subr.mxu0 0.0
      %639 = vmatpush1.msra.mxu0 0.0
      %640 = vmatprep.subr.mxu0 0.0
      %641 = vmatpush1.msra.mxu0 0.0
      %642 = vmatprep.subr.mxu0 0.0
      %643 = vmatpush1.msra.mxu0 0.0
      %644 = vmatprep.subr.mxu0 0.0
      %645 = vmatpush1.msra.mxu0 0.0
      %646 = vmatprep.subr.mxu0 0.0
      %647 = vmatpush1.msra.mxu0 0.0
      %648 = vmatprep.subr.mxu0 0.0
      %649 = vmatpush1.msra.mxu0 0.0
      %650 = vmatprep.subr.mxu0 0.0
      %651 = vmatpush1.msra.mxu0 0.0
      %652 = vmatprep.subr.mxu0 0.0
      %653 = vmatpush1.msra.mxu0 0.0
      %654 = vmatprep.subr.mxu0 0.0
      %655 = vmatpush1.msra.mxu0 0.0
      %656 = vmatprep.subr.mxu0 0.0
      %657 = vmatpush1.msra.mxu0 0.0
      %658 = vmatprep.subr.mxu0 0.0
      %659 = vmatpush1.msra.mxu0 0.0
      %660 = vmatprep.subr.mxu0 0.0
      %661 = vmatpush1.msra.mxu0 0.0
      %662 = vmatprep.subr.mxu0 0.0
      %663 = vmatpush1.msra.mxu0 0.0
      %664 = vmatprep.mubr.f32.mxu0 0.0
      %665 = vmatmul.mubr.f32.gmra.mrb[0].mxu0 %v562
      %v666 = vpop.f32.mrb[0].mxu0
      %v667 = vadd.f32 %v497, %v666
      %v668 = vpop.f32.mrb[0].mxu0
      %669 = vmatprep.mubr.f32.mxu0 0.0
      %670 = vmatmul.mubr.f32.gmra.mrb[0].mxu0 %v565
      %v671 = vpop.f32.mrb[0].mxu0
      %v672 = vadd.f32 %v502, %v671
      %v673 = vpop.f32.mrb[0].mxu0
      %674 = vmatprep.mubr.f32.mxu0 0.0
      %675 = vmatmul.mubr.f32.gmra.mrb[0].mxu0 %v568
      %v676 = vpop.f32.mrb[0].mxu0
      %v677 = vadd.f32 %v507, %v676
      %v678 = vpop.f32.mrb[0].mxu0
      %679 = vmatprep.mubr.f32.mxu0 0.0
      %680 = vmatmul.mubr.f32.gmra.mrb[0].mxu0 %v571
      %v681 = vpop.f32.mrb[0].mxu0
      %v682 = vadd.f32 %v512, %v681
      %v683 = vpop.f32.mrb[0].mxu0
      %684 = vmatprep.mubr.f32.mxu0 0.0
      %685 = vmatmul.mubr.f32.gmra.mrb[0].mxu0 %v574
      %v686 = vpop.f32.mrb[0].mxu0
      %v687 = vadd.f32 %v517, %v686
      %v688 = vpop.f32.mrb[0].mxu0
      %689 = vmatprep.mubr.f32.mxu0 0.0
      %690 = vmatmul.mubr.f32.gmra.mrb[0].mxu0 %v577
      %v691 = vpop.f32.mrb[0].mxu0
      %v692 = vadd.f32 %v522, %v691
      %v693 = vpop.f32.mrb[0].mxu0
      %694 = vmatprep.mubr.f32.mxu0 0.0
      %695 = vmatmul.mubr.f32.gmra.mrb[0].mxu0 %v580
      %v696 = vpop.f32.mrb[0].mxu0
      %v697 = vadd.f32 %v527, %v696
      %v698 = vpop.f32.mrb[0].mxu0
      %699 = vmatprep.mubr.f32.mxu0 0.0
      %700 = vmatmul.mubr.f32.gmra.mrb[0].mxu0 %v583
      %v701 = vpop.f32.mrb[0].mxu0
      %v702 = vadd.f32 %v532, %v701
      %v703 = vpop.f32.mrb[0].mxu0
      %704 = vmatprep.mubr.f32.mxu0 0.0
      %705 = vmatmul.mubr.f32.gmra.mrb[0].mxu0 %v586
      %v706 = vpop.f32.mrb[0].mxu0
      %v707 = vadd.f32 %v537, %v706
      %v708 = vpop.f32.mrb[0].mxu0
      %709 = vmatprep.mubr.f32.mxu0 0.0
      %710 = vmatmul.mubr.f32.gmra.mrb[0].mxu0 %v589
      %v711 = vpop.f32.mrb[0].mxu0
      %v712 = vadd.f32 %v542, %v711
      %v713 = vpop.f32.mrb[0].mxu0
      %714 = vmatprep.mubr.f32.mxu0 0.0
      %715 = vmatmul.mubr.f32.gmra.mrb[0].mxu0 %v592
      %v716 = vpop.f32.mrb[0].mxu0
      %v717 = vadd.f32 %v547, %v716
      %v718 = vpop.f32.mrb[0].mxu0
      %719 = vmatprep.mubr.f32.mxu0 0.0
      %720 = vmatmul.mubr.f32.gmra.mrb[0].mxu0 %v595
      %v721 = vpop.f32.mrb[0].mxu0
      %v722 = vadd.f32 %v552, %v721
      %v723 = vpop.f32.mrb[0].mxu0
      %724 = vmatprep.mubr.f32.mxu0 0.0
      %725 = vmatmul.mubr.f32.gmra.mrb[0].mxu0 %v598
      %v726 = vpop.f32.mrb[0].mxu0
      %v727 = vadd.f32 %v557, %v726
      %v728 = vpop.f32.mrb[0].mxu0
      %729 = vdwg.mxu0
      %v730 = vld [vmem:[%s4] sm:$0x1]
      %v732 = vlaneseq
      %v733 = vshrl.u32 %v732, 7
      %v734 = vsub.s32 0, %v733
      %v735 = vrot.slane %v730, %v734
      %v737 = vadd.f32 %v667, %v735
      %v738 = vadd.f32 %v672, %v735
      %v739 = vadd.f32 %v677, %v735
      %v740 = vadd.f32 %v682, %v735
      %v741 = vadd.f32 %v687, %v735
      %v742 = vadd.f32 %v692, %v735
      %v743 = vadd.f32 %v697, %v735
      %v744 = vadd.f32 %v702, %v735
      %v745 = vadd.f32 %v707, %v735
      %v746 = vadd.f32 %v712, %v735
      %v747 = vadd.f32 %v717, %v735
      %v748 = vadd.f32 %v722, %v735
      %v749 = vadd.f32 %v727, %v735
      %v750 = vmul.f32 %v737, 0.5
      %v751 = vmul.f32 %v738, 0.5
      %v752 = vmul.f32 %v739, 0.5
      %v753 = vmul.f32 %v740, 0.5
      %v754 = vmul.f32 %v741, 0.5
      %v755 = vmul.f32 %v742, 0.5
      %v756 = vmul.f32 %v743, 0.5
      %v757 = vmul.f32 %v744, 0.5
      %v758 = vmul.f32 %v745, 0.5
      %v759 = vmul.f32 %v746, 0.5
      %v760 = vmul.f32 %v747, 0.5
      %v761 = vmul.f32 %v748, 0.5
      %v762 = vmul.f32 %v749, 0.5
      %v763 = vmul.f32 %v737, 0.70710677
      %v764 = vmul.f32 %v738, 0.70710677
      %v765 = vmul.f32 %v739, 0.70710677
      %v766 = vmul.f32 %v740, 0.70710677
      %v767 = vmul.f32 %v741, 0.70710677
      %v768 = vmul.f32 %v742, 0.70710677
      %v769 = vmul.f32 %v743, 0.70710677
      %v770 = vmul.f32 %v744, 0.70710677
      %v771 = vmul.f32 %v745, 0.70710677
      %v772 = vmul.f32 %v746, 0.70710677
      %v773 = vmul.f32 %v747, 0.70710677
      %v774 = vmul.f32 %v748, 0.70710677
      %v775 = vmul.f32 %v749, 0.70710677
      %v776 = verf.f32.pop %v763
      %v777 = verf.f32.pop %v764
      %v778 = verf.f32.pop %v765
      %v779 = verf.f32.pop %v766
      %v780 = verf.f32.pop %v767
      %v781 = verf.f32.pop %v768
      %v782 = verf.f32.pop %v769
      %v783 = verf.f32.pop %v770
      %v784 = verf.f32.pop %v771
      %v785 = verf.f32.pop %v772
      %v786 = verf.f32.pop %v773
      %v787 = verf.f32.pop %v774
      %v788 = verf.f32.pop %v775
      %v789 = vadd.f32 %v776, 1.0
      %v790 = vadd.f32 %v777, 1.0
      %v791 = vadd.f32 %v778, 1.0
      %v792 = vadd.f32 %v779, 1.0
      %v793 = vadd.f32 %v780, 1.0
      %v794 = vadd.f32 %v781, 1.0
      %v795 = vadd.f32 %v782, 1.0
      %v796 = vadd.f32 %v783, 1.0
      %v797 = vadd.f32 %v784, 1.0
      %v798 = vadd.f32 %v785, 1.0
      %v799 = vadd.f32 %v786, 1.0
      %v800 = vadd.f32 %v787, 1.0
      %v801 = vadd.f32 %v788, 1.0
      %v802 = vmul.f32 %v750, %v789
      %v803 = vmul.f32 %v751, %v790
      %v804 = vmul.f32 %v752, %v791
      %v805 = vmul.f32 %v753, %v792
      %v806 = vmul.f32 %v754, %v793
      %v807 = vmul.f32 %v755, %v794
      %v808 = vmul.f32 %v756, %v795
      %v809 = vmul.f32 %v757, %v796
      %v810 = vmul.f32 %v758, %v797
      %v811 = vmul.f32 %v759, %v798
      %v812 = vmul.f32 %v760, %v799
      %v813 = vmul.f32 %v761, %v800
      %v814 = vmul.f32 %v762, %v801
      %v815 = vld [vmem:[%s5] sm:$0xff]
      %v816 = vld [vmem:[%s5 + $0x8] sm:$0xff]
      %v817 = vld [vmem:[%s5 + $0x10] sm:$0xff]
      %v818 = vld [vmem:[%s5 + $0x18] sm:$0xff]
      %v819 = vld [vmem:[%s6] sm:$0x1]
      %v821 = vlaneseq
      %v822 = vshrl.u32 %v821, 7
      %v823 = vsub.s32 0, %v822
      %v824 = vrot.slane %v819, %v823
      %vm826 = vcmask 261120
      %v828 = vsel %vm826, %v802, 0
      %v831 = vsel %vm826, %v803, 0
      %v834 = vsel %vm826, %v804, 0
      %v837 = vsel %vm826, %v805, 0
      %v840 = vsel %vm826, %v806, 0
      %v843 = vsel %vm826, %v807, 0
      %v846 = vsel %vm826, %v808, 0
      %v849 = vsel %vm826, %v809, 0
      %v852 = vsel %vm826, %v810, 0
      %v855 = vsel %vm826, %v811, 0
      %v858 = vsel %vm826, %v812, 0
      %v861 = vsel %vm826, %v813, 0
      %v864 = vsel %vm826, %v814, 0
      %866 = vmatprep.subr.mxu0 0.0
      %867 = vmatpush1.msra.mxu0 %v815
      %868 = vmatprep.subr.mxu0 0.0
      %869 = vmatpush1.msra.mxu0 %v816
      %870 = vmatprep.subr.mxu0 0.0
      %871 = vmatpush1.msra.mxu0 %v817
      %872 = vmatprep.subr.mxu0 0.0
      %873 = vmatpush1.msra.mxu0 %v818
      %874 = vmatprep.subr.mxu0 0.0
      %875 = vmatpush1.msra.mxu0 0.0
      %876 = vmatprep.subr.mxu0 0.0
      %877 = vmatpush1.msra.mxu0 0.0
      %878 = vmatprep.subr.mxu0 0.0
      %879 = vmatpush1.msra.mxu0 0.0
      %880 = vmatprep.subr.mxu0 0.0
      %881 = vmatpush1.msra.mxu0 0.0
      %882 = vmatprep.subr.mxu0 0.0
      %883 = vmatpush1.msra.mxu0 0.0
      %884 = vmatprep.subr.mxu0 0.0
      %885 = vmatpush1.msra.mxu0 0.0
      %886 = vmatprep.subr.mxu0 0.0
      %887 = vmatpush1.msra.mxu0 0.0
      %888 = vmatprep.subr.mxu0 0.0
      %889 = vmatpush1.msra.mxu0 0.0
      %890 = vmatprep.subr.mxu0 0.0
      %891 = vmatpush1.msra.mxu0 0.0
      %892 = vmatprep.subr.mxu0 0.0
      %893 = vmatpush1.msra.mxu0 0.0
      %894 = vmatprep.subr.mxu0 0.0
      %895 = vmatpush1.msra.mxu0 0.0
      %896 = vmatprep.subr.mxu0 0.0
      %897 = vmatpush1.msra.mxu0 0.0
      %898 = vmatprep.subr.mxu0 0.0
      %899 = vmatpush1.msra.mxu0 0.0
      %900 = vmatprep.subr.mxu0 0.0
      %901 = vmatpush1.msra.mxu0 0.0
      %902 = vmatprep.subr.mxu0 0.0
      %903 = vmatpush1.msra.mxu0 0.0
      %904 = vmatprep.subr.mxu0 0.0
      %905 = vmatpush1.msra.mxu0 0.0
      %906 = vmatprep.subr.mxu0 0.0
      %907 = vmatpush1.msra.mxu0 0.0
      %908 = vmatprep.subr.mxu0 0.0
      %909 = vmatpush1.msra.mxu0 0.0
      %910 = vmatprep.subr.mxu0 0.0
      %911 = vmatpush1.msra.mxu0 0.0
      %912 = vmatprep.subr.mxu0 0.0
      %913 = vmatpush1.msra.mxu0 0.0
      %914 = vmatprep.subr.mxu0 0.0
      %915 = vmatpush1.msra.mxu0 0.0
      %916 = vmatprep.subr.mxu0 0.0
      %917 = vmatpush1.msra.mxu0 0.0
      %918 = vmatprep.subr.mxu0 0.0
      %919 = vmatpush1.msra.mxu0 0.0
      %920 = vmatprep.subr.mxu0 0.0
      %921 = vmatpush1.msra.mxu0 0.0
      %922 = vmatprep.subr.mxu0 0.0
      %923 = vmatpush1.msra.mxu0 0.0
      %924 = vmatprep.subr.mxu0 0.0
      %925 = vmatpush1.msra.mxu0 0.0
      %926 = vmatprep.subr.mxu0 0.0
      %927 = vmatpush1.msra.mxu0 0.0
      %928 = vmatprep.subr.mxu0 0.0
      %929 = vmatpush1.msra.mxu0 0.0
      %930 = vmatprep.mubr.f32.mxu0 0.0
      %931 = vmatmul.mubr.f32.gmra.mrb[0].mxu0 %v828
      %v932 = vpop.f32.mrb[0].mxu0
      %v933 = vadd.f32 %v824, %v932
      %v934 = vpop.f32.mrb[0].mxu0
      %935 = vmatprep.mubr.f32.mxu0 0.0
      %936 = vmatmul.mubr.f32.gmra.mrb[0].mxu0 %v831
      %v937 = vpop.f32.mrb[0].mxu0
      %v938 = vadd.f32 %v824, %v937
      %v939 = vpop.f32.mrb[0].mxu0
      %940 = vmatprep.mubr.f32.mxu0 0.0
      %941 = vmatmul.mubr.f32.gmra.mrb[0].mxu0 %v834
      %v942 = vpop.f32.mrb[0].mxu0
      %v943 = vadd.f32 %v824, %v942
      %v944 = vpop.f32.mrb[0].mxu0
      %945 = vmatprep.mubr.f32.mxu0 0.0
      %946 = vmatmul.mubr.f32.gmra.mrb[0].mxu0 %v837
      %v947 = vpop.f32.mrb[0].mxu0
      %v948 = vadd.f32 %v824, %v947
      %v949 = vpop.f32.mrb[0].mxu0
      %950 = vmatprep.mubr.f32.mxu0 0.0
      %951 = vmatmul.mubr.f32.gmra.mrb[0].mxu0 %v840
      %v952 = vpop.f32.mrb[0].mxu0
      %v953 = vadd.f32 %v824, %v952
      %v954 = vpop.f32.mrb[0].mxu0
      %955 = vmatprep.mubr.f32.mxu0 0.0
      %956 = vmatmul.mubr.f32.gmra.mrb[0].mxu0 %v843
      %v957 = vpop.f32.mrb[0].mxu0
      %v958 = vadd.f32 %v824, %v957
      %v959 = vpop.f32.mrb[0].mxu0
      %960 = vmatprep.mubr.f32.mxu0 0.0
      %961 = vmatmul.mubr.f32.gmra.mrb[0].mxu0 %v846
      %v962 = vpop.f32.mrb[0].mxu0
      %v963 = vadd.f32 %v824, %v962
      %v964 = vpop.f32.mrb[0].mxu0
      %965 = vmatprep.mubr.f32.mxu0 0.0
      %966 = vmatmul.mubr.f32.gmra.mrb[0].mxu0 %v849
      %v967 = vpop.f32.mrb[0].mxu0
      %v968 = vadd.f32 %v824, %v967
      %v969 = vpop.f32.mrb[0].mxu0
      %970 = vmatprep.mubr.f32.mxu0 0.0
      %971 = vmatmul.mubr.f32.gmra.mrb[0].mxu0 %v852
      %v972 = vpop.f32.mrb[0].mxu0
      %v973 = vadd.f32 %v824, %v972
      %v974 = vpop.f32.mrb[0].mxu0
      %975 = vmatprep.mubr.f32.mxu0 0.0
      %976 = vmatmul.mubr.f32.gmra.mrb[0].mxu0 %v855
      %v977 = vpop.f32.mrb[0].mxu0
      %v978 = vadd.f32 %v824, %v977
      %v979 = vpop.f32.mrb[0].mxu0
      %980 = vmatprep.mubr.f32.mxu0 0.0
      %981 = vmatmul.mubr.f32.gmra.mrb[0].mxu0 %v858
      %v982 = vpop.f32.mrb[0].mxu0
      %v983 = vadd.f32 %v824, %v982
      %v984 = vpop.f32.mrb[0].mxu0
      %985 = vmatprep.mubr.f32.mxu0 0.0
      %986 = vmatmul.mubr.f32.gmra.mrb[0].mxu0 %v861
      %v987 = vpop.f32.mrb[0].mxu0
      %v988 = vadd.f32 %v824, %v987
      %v989 = vpop.f32.mrb[0].mxu0
      %990 = vmatprep.mubr.f32.mxu0 0.0
      %991 = vmatmul.mubr.f32.gmra.mrb[0].mxu0 %v864
      %v992 = vpop.f32.mrb[0].mxu0
      %v993 = vadd.f32 %v824, %v992
      %v994 = vpop.f32.mrb[0].mxu0
      %995 = vdwg.mxu0
      %v996 = vmul.f32 %v933, 0.5
      %v997 = vmul.f32 %v938, 0.5
      %v998 = vmul.f32 %v943, 0.5
      %v999 = vmul.f32 %v948, 0.5
      %v1000 = vmul.f32 %v953, 0.5
      %v1001 = vmul.f32 %v958, 0.5
      %v1002 = vmul.f32 %v963, 0.5
      %v1003 = vmul.f32 %v968, 0.5
      %v1004 = vmul.f32 %v973, 0.5
      %v1005 = vmul.f32 %v978, 0.5
      %v1006 = vmul.f32 %v983, 0.5
      %v1007 = vmul.f32 %v988, 0.5
      %v1008 = vmul.f32 %v993, 0.5
      %v1009 = vmul.f32 %v933, 0.70710677
      %v1010 = vmul.f32 %v938, 0.70710677
      %v1011 = vmul.f32 %v943, 0.70710677
      %v1012 = vmul.f32 %v948, 0.70710677
      %v1013 = vmul.f32 %v953, 0.70710677
      %v1014 = vmul.f32 %v958, 0.70710677
      %v1015 = vmul.f32 %v963, 0.70710677
      %v1016 = vmul.f32 %v968, 0.70710677
      %v1017 = vmul.f32 %v973, 0.70710677
      %v1018 = vmul.f32 %v978, 0.70710677
      %v1019 = vmul.f32 %v983, 0.70710677
      %v1020 = vmul.f32 %v988, 0.70710677
      %v1021 = vmul.f32 %v993, 0.70710677
      %v1022 = verf.f32.pop %v1009
      %v1023 = verf.f32.pop %v1010
      %v1024 = verf.f32.pop %v1011
      %v1025 = verf.f32.pop %v1012
      %v1026 = verf.f32.pop %v1013
      %v1027 = verf.f32.pop %v1014
      %v1028 = verf.f32.pop %v1015
      %v1029 = verf.f32.pop %v1016
      %v1030 = verf.f32.pop %v1017
      %v1031 = verf.f32.pop %v1018
      %v1032 = verf.f32.pop %v1019
      %v1033 = verf.f32.pop %v1020
      %v1034 = verf.f32.pop %v1021
      %v1035 = vadd.f32 %v1022, 1.0
      %v1036 = vadd.f32 %v1023, 1.0
      %v1037 = vadd.f32 %v1024, 1.0
      %v1038 = vadd.f32 %v1025, 1.0
      %v1039 = vadd.f32 %v1026, 1.0
      %v1040 = vadd.f32 %v1027, 1.0
      %v1041 = vadd.f32 %v1028, 1.0
      %v1042 = vadd.f32 %v1029, 1.0
      %v1043 = vadd.f32 %v1030, 1.0
      %v1044 = vadd.f32 %v1031, 1.0
      %v1045 = vadd.f32 %v1032, 1.0
      %v1046 = vadd.f32 %v1033, 1.0
      %v1047 = vadd.f32 %v1034, 1.0
      %v1048 = vmul.f32 %v996, %v1035
      %v1049 = vmul.f32 %v997, %v1036
      %v1050 = vmul.f32 %v998, %v1037
      %v1051 = vmul.f32 %v999, %v1038
      %v1052 = vmul.f32 %v1000, %v1039
      %v1053 = vmul.f32 %v1001, %v1040
      %v1054 = vmul.f32 %v1002, %v1041
      %v1055 = vmul.f32 %v1003, %v1042
      %v1056 = vmul.f32 %v1004, %v1043
      %v1057 = vmul.f32 %v1005, %v1044
      %v1058 = vmul.f32 %v1006, %v1045
      %v1059 = vmul.f32 %v1007, %v1046
      %v1060 = vmul.f32 %v1008, %v1047
      %v1061 = vld [vmem:[%s7] sm:$0xff]
      %v1062 = vld [vmem:[%s7 + $0x8] sm:$0xff]
      %v1063 = vld [vmem:[%s7 + $0x10] sm:$0xff]
      %v1064 = vld [vmem:[%s7 + $0x18] sm:$0xff]
      %v1065 = vld [vmem:[%s8] sm:$0x1]
      %v1067 = vlaneseq
      %v1068 = vshrl.u32 %v1067, 7
      %v1069 = vsub.s32 0, %v1068
      %v1070 = vrot.slane %v1065, %v1069
      %v1073 = vsel %vm826, %v1048, 0
      %v1076 = vsel %vm826, %v1049, 0
      %v1079 = vsel %vm826, %v1050, 0
      %v1082 = vsel %vm826, %v1051, 0
      %v1085 = vsel %vm826, %v1052, 0
      %v1088 = vsel %vm826, %v1053, 0
      %v1091 = vsel %vm826, %v1054, 0
      %v1094 = vsel %vm826, %v1055, 0
      %v1097 = vsel %vm826, %v1056, 0
      %v1100 = vsel %vm826, %v1057, 0
      %v1103 = vsel %vm826, %v1058, 0
      %v1106 = vsel %vm826, %v1059, 0
      %v1109 = vsel %vm826, %v1060, 0
      %1111 = vmatprep.subr.mxu0 0.0
      %1112 = vmatpush1.msra.mxu0 %v1061
      %1113 = vmatprep.subr.mxu0 0.0
      %1114 = vmatpush1.msra.mxu0 %v1062
      %1115 = vmatprep.subr.mxu0 0.0
      %1116 = vmatpush1.msra.mxu0 %v1063
      %1117 = vmatprep.subr.mxu0 0.0
      %1118 = vmatpush1.msra.mxu0 %v1064
      %1119 = vmatprep.subr.mxu0 0.0
      %1120 = vmatpush1.msra.mxu0 0.0
      %1121 = vmatprep.subr.mxu0 0.0
      %1122 = vmatpush1.msra.mxu0 0.0
      %1123 = vmatprep.subr.mxu0 0.0
      %1124 = vmatpush1.msra.mxu0 0.0
      %1125 = vmatprep.subr.mxu0 0.0
      %1126 = vmatpush1.msra.mxu0 0.0
      %1127 = vmatprep.subr.mxu0 0.0
      %1128 = vmatpush1.msra.mxu0 0.0
      %1129 = vmatprep.subr.mxu0 0.0
      %1130 = vmatpush1.msra.mxu0 0.0
      %1131 = vmatprep.subr.mxu0 0.0
      %1132 = vmatpush1.msra.mxu0 0.0
      %1133 = vmatprep.subr.mxu0 0.0
      %1134 = vmatpush1.msra.mxu0 0.0
      %1135 = vmatprep.subr.mxu0 0.0
      %1136 = vmatpush1.msra.mxu0 0.0
      %1137 = vmatprep.subr.mxu0 0.0
      %1138 = vmatpush1.msra.mxu0 0.0
      %1139 = vmatprep.subr.mxu0 0.0
      %1140 = vmatpush1.msra.mxu0 0.0
      %1141 = vmatprep.subr.mxu0 0.0
      %1142 = vmatpush1.msra.mxu0 0.0
      %1143 = vmatprep.subr.mxu0 0.0
      %1144 = vmatpush1.msra.mxu0 0.0
      %1145 = vmatprep.subr.mxu0 0.0
      %1146 = vmatpush1.msra.mxu0 0.0
      %1147 = vmatprep.subr.mxu0 0.0
      %1148 = vmatpush1.msra.mxu0 0.0
      %1149 = vmatprep.subr.mxu0 0.0
      %1150 = vmatpush1.msra.mxu0 0.0
      %1151 = vmatprep.subr.mxu0 0.0
      %1152 = vmatpush1.msra.mxu0 0.0
      %1153 = vmatprep.subr.mxu0 0.0
      %1154 = vmatpush1.msra.mxu0 0.0
      %1155 = vmatprep.subr.mxu0 0.0
      %1156 = vmatpush1.msra.mxu0 0.0
      %1157 = vmatprep.subr.mxu0 0.0
      %1158 = vmatpush1.msra.mxu0 0.0
      %1159 = vmatprep.subr.mxu0 0.0
      %1160 = vmatpush1.msra.mxu0 0.0
      %1161 = vmatprep.subr.mxu0 0.0
      %1162 = vmatpush1.msra.mxu0 0.0
      %1163 = vmatprep.subr.mxu0 0.0
      %1164 = vmatpush1.msra.mxu0 0.0
      %1165 = vmatprep.subr.mxu0 0.0
      %1166 = vmatpush1.msra.mxu0 0.0
      %1167 = vmatprep.subr.mxu0 0.0
      %1168 = vmatpush1.msra.mxu0 0.0
      %1169 = vmatprep.subr.mxu0 0.0
      %1170 = vmatpush1.msra.mxu0 0.0
      %1171 = vmatprep.subr.mxu0 0.0
      %1172 = vmatpush1.msra.mxu0 0.0
      %1173 = vmatprep.subr.mxu0 0.0
      %1174 = vmatpush1.msra.mxu0 0.0
      %1175 = vmatprep.mubr.f32.mxu0 0.0
      %1176 = vmatmul.mubr.f32.gmra.mrb[0].mxu0 %v1073
      %v1177 = vpop.f32.mrb[0].mxu0
      %v1178 = vadd.f32 %v1070, %v1177
      %v1179 = vpop.f32.mrb[0].mxu0
      %1180 = vmatprep.mubr.f32.mxu0 0.0
      %1181 = vmatmul.mubr.f32.gmra.mrb[0].mxu0 %v1076
      %v1182 = vpop.f32.mrb[0].mxu0
      %v1183 = vadd.f32 %v1070, %v1182
      %v1184 = vpop.f32.mrb[0].mxu0
      %1185 = vmatprep.mubr.f32.mxu0 0.0
      %1186 = vmatmul.mubr.f32.gmra.mrb[0].mxu0 %v1079
      %v1187 = vpop.f32.mrb[0].mxu0
      %v1188 = vadd.f32 %v1070, %v1187
      %v1189 = vpop.f32.mrb[0].mxu0
      %1190 = vmatprep.mubr.f32.mxu0 0.0
      %1191 = vmatmul.mubr.f32.gmra.mrb[0].mxu0 %v1082
      %v1192 = vpop.f32.mrb[0].mxu0
      %v1193 = vadd.f32 %v1070, %v1192
      %v1194 = vpop.f32.mrb[0].mxu0
      %1195 = vmatprep.mubr.f32.mxu0 0.0
      %1196 = vmatmul.mubr.f32.gmra.mrb[0].mxu0 %v1085
      %v1197 = vpop.f32.mrb[0].mxu0
      %v1198 = vadd.f32 %v1070, %v1197
      %v1199 = vpop.f32.mrb[0].mxu0
      %1200 = vmatprep.mubr.f32.mxu0 0.0
      %1201 = vmatmul.mubr.f32.gmra.mrb[0].mxu0 %v1088
      %v1202 = vpop.f32.mrb[0].mxu0
      %v1203 = vadd.f32 %v1070, %v1202
      %v1204 = vpop.f32.mrb[0].mxu0
      %1205 = vmatprep.mubr.f32.mxu0 0.0
      %1206 = vmatmul.mubr.f32.gmra.mrb[0].mxu0 %v1091
      %v1207 = vpop.f32.mrb[0].mxu0
      %v1208 = vadd.f32 %v1070, %v1207
      %v1209 = vpop.f32.mrb[0].mxu0
      %1210 = vmatprep.mubr.f32.mxu0 0.0
      %1211 = vmatmul.mubr.f32.gmra.mrb[0].mxu0 %v1094
      %v1212 = vpop.f32.mrb[0].mxu0
      %v1213 = vadd.f32 %v1070, %v1212
      %v1214 = vpop.f32.mrb[0].mxu0
      %1215 = vmatprep.mubr.f32.mxu0 0.0
      %1216 = vmatmul.mubr.f32.gmra.mrb[0].mxu0 %v1097
      %v1217 = vpop.f32.mrb[0].mxu0
      %v1218 = vadd.f32 %v1070, %v1217
      %v1219 = vpop.f32.mrb[0].mxu0
      %1220 = vmatprep.mubr.f32.mxu0 0.0
      %1221 = vmatmul.mubr.f32.gmra.mrb[0].mxu0 %v1100
      %v1222 = vpop.f32.mrb[0].mxu0
      %v1223 = vadd.f32 %v1070, %v1222
      %v1224 = vpop.f32.mrb[0].mxu0
      %1225 = vmatprep.mubr.f32.mxu0 0.0
      %1226 = vmatmul.mubr.f32.gmra.mrb[0].mxu0 %v1103
      %v1227 = vpop.f32.mrb[0].mxu0
      %v1228 = vadd.f32 %v1070, %v1227
      %v1229 = vpop.f32.mrb[0].mxu0
      %1230 = vmatprep.mubr.f32.mxu0 0.0
      %1231 = vmatmul.mubr.f32.gmra.mrb[0].mxu0 %v1106
      %v1232 = vpop.f32.mrb[0].mxu0
      %v1233 = vadd.f32 %v1070, %v1232
      %v1234 = vpop.f32.mrb[0].mxu0
      %1235 = vmatprep.mubr.f32.mxu0 0.0
      %1236 = vmatmul.mubr.f32.gmra.mrb[0].mxu0 %v1109
      %v1237 = vpop.f32.mrb[0].mxu0
      %v1238 = vadd.f32 %v1070, %v1237
      %v1239 = vpop.f32.mrb[0].mxu0
      %1240 = vdwg.mxu0
      %vm1241 = vcmask 130048
      %1242 = vst.msk [vmem:[%s356] sm:$0xff] %vm1241, %v1178
      %1243 = vst.msk [vmem:[%s356 + $0x8] sm:$0xff] %vm1241, %v1183
      %1244 = vst.msk [vmem:[%s356 + $0x10] sm:$0xff] %vm1241, %v1188
      %1245 = vst.msk [vmem:[%s356 + $0x18] sm:$0xff] %vm1241, %v1193
      %1246 = vst.msk [vmem:[%s356 + $0x20] sm:$0xff] %vm1241, %v1198
      %1247 = vst.msk [vmem:[%s356 + $0x28] sm:$0xff] %vm1241, %v1203
      %1248 = vst.msk [vmem:[%s356 + $0x30] sm:$0xff] %vm1241, %v1208
      %1249 = vst.msk [vmem:[%s356 + $0x38] sm:$0xff] %vm1241, %v1213
      %1250 = vst.msk [vmem:[%s356 + $0x40] sm:$0xff] %vm1241, %v1218
      %1251 = vst.msk [vmem:[%s356 + $0x48] sm:$0xff] %vm1241, %v1223
      %1252 = vst.msk [vmem:[%s356 + $0x50] sm:$0xff] %vm1241, %v1228
      %1253 = vst.msk [vmem:[%s356 + $0x58] sm:$0xff] %vm1241, %v1233
      %1254 = vst.msk [vmem:[%s356 + $0x60] sm:$0xff] %vm1241, %v1238
      %s1255 = smul.u32 13, %s20
      %p1256 = scmp.lt.s32.totalorder %s1255, 25
      %s1257 = scalar_select %p1256, %s1255, 25
      %s1258 = smul.addr %s1257, 8
      %s1259 = scalar_lea.vmem %s9, %s1258
      // Predicated region
      $region57: #{tpu_custom_call.1} parent=55 // pred_check
        %p1260 = pneg %p237
      $region58: #{tpu_custom_call.1} parent=55 // pred_check_branch
        %1262 = sbr.rel (%p1260) target = $region60
      $region59: #{tpu_custom_call.1} parent=55 // pred_region
        %s1263 = smul.u32 13, %s20
      $region60: #{tpu_custom_call.1} parent=55 // pred_fallthru
        _
    $region56: #{tpu_custom_call.1} parent=5 // pred_fallthru
      _
    %p1264 = scmp.le.s32.totalorder 2, %s15
    // Predicated region
    $region61: #{tpu_custom_call.1} parent=5 // pred_check
      %p1265 = pneg %p1264
    $region62: #{tpu_custom_call.1} parent=5 // pred_check_branch
      %1267 = sbr.rel (%p1265) target = $region64
    $region63: #{tpu_custom_call.1} parent=5 // pred_region
      %s1268 = ssub.s32 %s15, 2
      // Predicated region
      $region65: #{tpu_custom_call.1} parent=63 // pred_check
        %p1269 = pneg %p243
      $region66: #{tpu_custom_call.1} parent=63 // pred_check_branch
        %1271 = sbr.rel (%p1269) target = $region68
      $region67: #{tpu_custom_call.1} parent=63 // pred_region
        %s1272 = smul.u32 13, %s21
        %p1273 = scmp.lt.s32.totalorder %s1272, 25
        %s1274 = scalar_select %p1273, %s1272, 25
        %s1275 = smul.addr %s1274, 8
        %s1276 = scalar_lea.vmem %s9, %s1275
      $region68: #{tpu_custom_call.1} parent=63 // pred_fallthru
        _
    $region64: #{tpu_custom_call.1} parent=5 // pred_fallthru
      _
  $region6: #{tpu_custom_call.1} parent=0 // loop_footer
    %s19 = sadd.s32 1, %s15
  $region7: #{tpu_custom_call.1} parent=0 // loop_footer_branch
    %14 = sbr.rel target = $region3
  $region8: #{tpu_custom_call.1} parent=0 // loop_exit
    _

</llo_original>
